<compile_context>
chip_gen: v6e
topology: v6e:2x2x1
jax: 0.10.0
libtpu: 0.0.40
codegen_flags: <defaults>
</compile_context>

<pallas_src>
import jax
import jax.numpy as jnp
from jax.experimental import pallas as pl
from jax.experimental.pallas import tpu as pltpu


def _round_up(x, m):
    return ((x + m - 1) // m) * m


# ----------------------------------------------------------------------------
# Kernel: one whole sample per grid step, fused 3x3 gather + fused dual conv.
#   x_ref     : (1, C, HW)     f32   raw flattened sample (no HBM intermediates)
#   w_ref     : (9, C2, C)     bf16  per-tap fused [shift; log-scale] weights
#   b_ref     : (C2, 1)        f32   fused bias (bf16-rounded)
#   m_ref     : (2, HW)        bf16  exact 0/1 column-edge masks (dx=-1, dx=+1)
#   shift_ref : (1, Cout, HW)  f32   output (lane-dense, already NCHW-ordered)
#   logsc_ref : (1, Cout, HW)  f32   output
#   pad_ref   : (C, HW+2*base) bf16  VMEM scratch: zero-padded flattened slab
# ----------------------------------------------------------------------------
def _make_coupler_kernel(img_w, hw, base):
    def kernel(x_ref, w_ref, b_ref, m_ref, shift_ref, logsc_ref, pad_ref):
        c2 = w_ref.shape[1]
        cout = shift_ref.shape[1]

        # Build the zero-padded flattened slab in VMEM (the fused im2col source).
        # The aprons stay zero, so row-out-of-range taps read exact zeros.
        pad_ref[...] = jnp.zeros_like(pad_ref)
        pad_ref[:, pl.ds(base, hw)] = x_ref[0].astype(pad_ref.dtype)

        w_all = w_ref[...]                       # (9, C2, C) bf16
        masks = m_ref[...]                       # (2, HW)    bf16
        m_left = masks[0:1, :]                   # valid where w-1 >= 0
        m_right = masks[1:2, :]                  # valid where w+1 <= W-1

        acc = jnp.zeros((c2, hw), jnp.float32)
        for ky in range(3):
            for kx in range(3):
                off = base + (ky - 1) * img_w + (kx - 1)
                tap = pad_ref[:, pl.ds(off, hw)]        # (C, HW) shifted window
                if kx == 0:
                    tap = tap * m_left                   # mask wrapped column
                elif kx == 2:
                    tap = tap * m_right
                acc = acc + jnp.dot(w_all[3 * ky + kx], tap,
                                    preferred_element_type=jnp.float32)

        acc = acc + b_ref[...]                   # (C2, 1) broadcast bias add
        shift_ref[0, :, :] = acc[:cout, :]
        logsc_ref[0, :, :] = acc[cout:, :]

    return kernel


def independent_coupler_forward(x, params, *, compute_dtype=jnp.bfloat16):
    """x: (N, C, H, W) NCHW float32.  Returns {'shift', 'log-scale'} NCHW f32."""
    N, C, H, W = x.shape
    HW = H * W
    Cout = params["shift_w"].shape[0]
    C2 = 2 * Cout                              # both sub-nets fused on output dim

    # Fused per-tap weights, tap index t = 3*ky + kx  ->  (9, C2, C).
    w_cat = jnp.concatenate([params["shift_w"], params["logscale_w"]], axis=0)
    wt = jnp.transpose(w_cat, (2, 3, 0, 1)).reshape(9, C2, C).astype(compute_dtype)

    # Fused bias, rounded through compute_dtype to mirror the operand rounding.
    b_cat = jnp.concatenate([params["shift_b"], params["logscale_b"]])
    b_cat = b_cat.astype(compute_dtype).astype(jnp.float32).reshape(C2, 1)

    # Column-edge validity masks (exact 0/1 in bf16): row 0 -> taps with dx=-1,
    # row 1 -> taps with dx=+1.  Precomputed so the kernel needs no div/mod.
    col = jnp.arange(HW, dtype=jnp.int32) % W
    masks = jnp.stack([col >= 1, col <= W - 2]).astype(compute_dtype)   # (2, HW)

    base = _round_up(W + 1, 128)               # lane-aligned centre of the slab
    hw_pad = HW + 2 * base                     # tiny VMEM scratch width

    xf = x.reshape(N, C, HW)                   # free reshape of contiguous dims

    kernel = _make_coupler_kernel(W, HW, base)
    shift, logsc = pl.pallas_call(
        kernel,
        out_shape=(jax.ShapeDtypeStruct((N, Cout, HW), jnp.float32),
                   jax.ShapeDtypeStruct((N, Cout, HW), jnp.float32)),
        grid_spec=pltpu.PrefetchScalarGridSpec(
            num_scalar_prefetch=0,
            grid=(N,),
            in_specs=[
                pl.BlockSpec((1, C, HW), lambda n: (n, 0, 0)),   # raw f32 sample
                pl.BlockSpec((9, C2, C), lambda n: (0, 0, 0)),   # fused tap weights
                pl.BlockSpec((C2, 1), lambda n: (0, 0)),         # fused bias
                pl.BlockSpec((2, HW), lambda n: (0, 0)),         # edge masks
            ],
            out_specs=[
                pl.BlockSpec((1, Cout, HW), lambda n: (n, 0, 0)),
                pl.BlockSpec((1, Cout, HW), lambda n: (n, 0, 0)),
            ],
            scratch_shapes=[pltpu.VMEM((C, hw_pad), compute_dtype)],
        ),
        compiler_params=pltpu.CompilerParams(
            dimension_semantics=("parallel",)),
    )(xf, wt, b_cat, masks)

    return {"shift": shift.reshape(N, Cout, H, W),
            "log-scale": logsc.reshape(N, Cout, H, W)}


# ----------------------------------------------------------------------------
# Plain-JAX references (for correctness checks).
# ----------------------------------------------------------------------------
def _reference_forward(x, params, *, compute_dtype=jnp.float32):
    """Reference conv on inputs rounded to compute_dtype, accumulated in f32."""
    xr = x.astype(compute_dtype).astype(jnp.float32)

    def conv(w, b):
        wr = w.astype(compute_dtype).astype(jnp.float32)
        br = b.astype(compute_dtype).astype(jnp.float32)
        y = jax.lax.conv_general_dilated(
            xr, wr, window_strides=(1, 1), padding="SAME",
            dimension_numbers=("NCHW", "OIHW", "NCHW"))
        return y + br.reshape(1, -1, 1, 1)

    return {"shift": conv(params["shift_w"], params["shift_b"]),
            "log-scale": conv(params["logscale_w"], params["logscale_b"])}


if __name__ == "__main__":
    key = jax.random.PRNGKey(0)
    kx, kws, kbs, kwl, kbl = jax.random.split(key, 5)

    N, C, H, W = 2, 4, 16, 16
    x = jax.random.normal(kx, (N, C, H, W), dtype=jnp.float32)

    params = {
        "shift_w": 0.1 * jax.random.normal(kws, (C, C, 3, 3), jnp.float32),
        "shift_b": 0.01 * jax.random.normal(kbs, (C,), jnp.float32),
        "logscale_w": 0.1 * jax.random.normal(kwl, (C, C, 3, 3), jnp.float32),
        "logscale_b": 0.01 * jax.random.normal(kbl, (C,), jnp.float32),
    }

    out = independent_coupler_forward(x, params)      # bf16 operands, f32 accum
    jax.block_until_ready(out)

    assert out["shift"].shape == (N, C, H, W)
    assert out["log-scale"].shape == (N, C, H, W)

    # Tight check vs. a reference using the same bf16-rounded operands
    # (only f32 accumulation-order differences remain).
    ref_bf16 = _reference_forward(x, params, compute_dtype=jnp.bfloat16)
    assert jnp.allclose(out["shift"], ref_bf16["shift"], atol=1e-4, rtol=1e-4)
    assert jnp.allclose(out["log-scale"], ref_bf16["log-scale"],
                        atol=1e-4, rtol=1e-4)

    # Loose sanity check vs. the full-f32 reference (bf16 rounding only).
    ref_f32 = _reference_forward(x, params, compute_dtype=jnp.float32)
    assert jnp.allclose(out["shift"], ref_f32["shift"], atol=3e-2, rtol=3e-2)
    assert jnp.allclose(out["log-scale"], ref_f32["log-scale"],
                        atol=3e-2, rtol=3e-2)

    print("KERNEL_OK")
</pallas_src>

<mosaic_0001>
module attributes {stable_mosaic.version = 11 : i64} {
  func.func @kernel(%arg0: i32, %arg1: memref<1x4x256xf32, #tpu.memory_space<vmem>>, %arg2: memref<9x8x4xbf16, #tpu.memory_space<vmem>>, %arg3: memref<8x1xf32, #tpu.memory_space<vmem>>, %arg4: memref<2x256xbf16, #tpu.memory_space<vmem>>, %arg5: memref<1x4x256xf32, #tpu.memory_space<vmem>>, %arg6: memref<1x4x256xf32, #tpu.memory_space<vmem>>, %arg7: memref<4x512xbf16, #tpu.memory_space<vmem>>) attributes {dimension_semantics = [#tpu.dimension_semantics<parallel>], iteration_bounds = array<i64: 2>, scalar_prefetch = 0 : i64, scratch_operands = 1 : i64, tpu.core_type = #tpu.core_type<tc>, window_params = [{transform_indices = @transform_0, window_bounds = array<i64: 1, 4, 256>}, {pipeline_mode = #tpu.pipeline_mode<synchronous>, transform_indices = @transform_1, window_bounds = array<i64: 9, 8, 4>}, {pipeline_mode = #tpu.pipeline_mode<synchronous>, transform_indices = @transform_2, window_bounds = array<i64: 8, 1>}, {pipeline_mode = #tpu.pipeline_mode<synchronous>, transform_indices = @transform_3, window_bounds = array<i64: 2, 256>}, {transform_indices = @transform_4, window_bounds = array<i64: 1, 4, 256>}, {transform_indices = @transform_5, window_bounds = array<i64: 1, 4, 256>}]} {
    %cst = arith.constant 0.000000e+00 : bf16
    %0 = vector.broadcast %cst : bf16 to vector<4x512xbf16>
    %c0 = arith.constant 0 : index
    %c0_0 = arith.constant 0 : index
    %1 = vector.load %arg7[%c0, %c0_0] : memref<4x512xbf16, #tpu.memory_space<vmem>>, vector<4x512xbf16>
    tpu.vector_store %arg7[%c0, %c0_0], %0 {strides = array<i32>} : memref<4x512xbf16, #tpu.memory_space<vmem>>, vector<4x512xbf16>,
    %c0_1 = arith.constant 0 : index
    %c0_2 = arith.constant 0 : index
    %c0_3 = arith.constant 0 : index
    %2 = vector.load %arg1[%c0_1, %c0_2, %c0_3] : memref<1x4x256xf32, #tpu.memory_space<vmem>>, vector<1x4x256xf32>
    %3 = vector.shape_cast %2 : vector<1x4x256xf32> to vector<4x256xf32>
    %4 = arith.truncf %3 : vector<4x256xf32> to vector<4x256xbf16>
    %c0_4 = arith.constant 0 : index
    %c128 = arith.constant 128 : index
    %5 = vector.load %arg7[%c0_4, %c128] : memref<4x512xbf16, #tpu.memory_space<vmem>>, vector<4x256xbf16>
    tpu.vector_store %arg7[%c0_4, %c128], %4 {strides = array<i32>} : memref<4x512xbf16, #tpu.memory_space<vmem>>, vector<4x256xbf16>,
    %c0_5 = arith.constant 0 : index
    %c0_6 = arith.constant 0 : index
    %c0_7 = arith.constant 0 : index
    %6 = vector.load %arg2[%c0_5, %c0_6, %c0_7] : memref<9x8x4xbf16, #tpu.memory_space<vmem>>, vector<9x8x4xbf16>
    %c0_8 = arith.constant 0 : index
    %c0_9 = arith.constant 0 : index
    %7 = vector.load %arg4[%c0_8, %c0_9] : memref<2x256xbf16, #tpu.memory_space<vmem>>, vector<2x256xbf16>
    %8 = vector.extract_strided_slice %7 {offsets = [0, 0], sizes = [1, 256], strides = [1, 1]} : vector<2x256xbf16> to vector<1x256xbf16>
    %9 = vector.extract_strided_slice %7 {offsets = [1, 0], sizes = [1, 256], strides = [1, 1]} : vector<2x256xbf16> to vector<1x256xbf16>
    %cst_10 = arith.constant 0.000000e+00 : f32
    %10 = vector.broadcast %cst_10 : f32 to vector<8x256xf32>
    %c0_11 = arith.constant 0 : index
    %c111 = arith.constant 111 : index
    %11 = vector.load %arg7[%c0_11, %c111] : memref<4x512xbf16, #tpu.memory_space<vmem>>, vector<4x256xbf16>
    %12 = vector.broadcast %8 : vector<1x256xbf16> to vector<4x256xbf16>
    %13 = arith.mulf %11, %12 : vector<4x256xbf16>
    %14 = vector.extract_strided_slice %6 {offsets = [0, 0, 0], sizes = [1, 8, 4], strides = [1, 1, 1]} : vector<9x8x4xbf16> to vector<1x8x4xbf16>
    %15 = vector.shape_cast %14 : vector<1x8x4xbf16> to vector<8x4xbf16>
    %cst_12 = arith.constant dense<0.000000e+00> : vector<8x256xf32>
    %16 = tpu.matmul %15, %13, %cst_12 {dimension_numbers = #tpu.dot_dimension_numbers<[1], [0], [0], [1], [0, 0, 1, 1], [], []>} : vector<8x4xbf16>, vector<4x256xbf16>, vector<8x256xf32> -> vector<8x256xf32>
    %17 = arith.addf %10, %16 : vector<8x256xf32>
    %c0_13 = arith.constant 0 : index
    %c112 = arith.constant 112 : index
    %18 = vector.load %arg7[%c0_13, %c112] : memref<4x512xbf16, #tpu.memory_space<vmem>>, vector<4x256xbf16>
    %19 = vector.extract_strided_slice %6 {offsets = [1, 0, 0], sizes = [1, 8, 4], strides = [1, 1, 1]} : vector<9x8x4xbf16> to vector<1x8x4xbf16>
    %20 = vector.shape_cast %19 : vector<1x8x4xbf16> to vector<8x4xbf16>
    %cst_14 = arith.constant dense<0.000000e+00> : vector<8x256xf32>
    %21 = tpu.matmul %20, %18, %cst_14 {dimension_numbers = #tpu.dot_dimension_numbers<[1], [0], [0], [1], [0, 0, 1, 1], [], []>} : vector<8x4xbf16>, vector<4x256xbf16>, vector<8x256xf32> -> vector<8x256xf32>
    %22 = arith.addf %17, %21 : vector<8x256xf32>
    %c0_15 = arith.constant 0 : index
    %c113 = arith.constant 113 : index
    %23 = vector.load %arg7[%c0_15, %c113] : memref<4x512xbf16, #tpu.memory_space<vmem>>, vector<4x256xbf16>
    %24 = vector.broadcast %9 : vector<1x256xbf16> to vector<4x256xbf16>
    %25 = arith.mulf %23, %24 : vector<4x256xbf16>
    %26 = vector.extract_strided_slice %6 {offsets = [2, 0, 0], sizes = [1, 8, 4], strides = [1, 1, 1]} : vector<9x8x4xbf16> to vector<1x8x4xbf16>
    %27 = vector.shape_cast %26 : vector<1x8x4xbf16> to vector<8x4xbf16>
    %cst_16 = arith.constant dense<0.000000e+00> : vector<8x256xf32>
    %28 = tpu.matmul %27, %25, %cst_16 {dimension_numbers = #tpu.dot_dimension_numbers<[1], [0], [0], [1], [0, 0, 1, 1], [], []>} : vector<8x4xbf16>, vector<4x256xbf16>, vector<8x256xf32> -> vector<8x256xf32>
    %29 = arith.addf %22, %28 : vector<8x256xf32>
    %c0_17 = arith.constant 0 : index
    %c127 = arith.constant 127 : index
    %30 = vector.load %arg7[%c0_17, %c127] : memref<4x512xbf16, #tpu.memory_space<vmem>>, vector<4x256xbf16>
    %31 = vector.broadcast %8 : vector<1x256xbf16> to vector<4x256xbf16>
    %32 = arith.mulf %30, %31 : vector<4x256xbf16>
    %33 = vector.extract_strided_slice %6 {offsets = [3, 0, 0], sizes = [1, 8, 4], strides = [1, 1, 1]} : vector<9x8x4xbf16> to vector<1x8x4xbf16>
    %34 = vector.shape_cast %33 : vector<1x8x4xbf16> to vector<8x4xbf16>
    %cst_18 = arith.constant dense<0.000000e+00> : vector<8x256xf32>
    %35 = tpu.matmul %34, %32, %cst_18 {dimension_numbers = #tpu.dot_dimension_numbers<[1], [0], [0], [1], [0, 0, 1, 1], [], []>} : vector<8x4xbf16>, vector<4x256xbf16>, vector<8x256xf32> -> vector<8x256xf32>
    %36 = arith.addf %29, %35 : vector<8x256xf32>
    %c0_19 = arith.constant 0 : index
    %c128_20 = arith.constant 128 : index
    %37 = vector.load %arg7[%c0_19, %c128_20] : memref<4x512xbf16, #tpu.memory_space<vmem>>, vector<4x256xbf16>
    %38 = vector.extract_strided_slice %6 {offsets = [4, 0, 0], sizes = [1, 8, 4], strides = [1, 1, 1]} : vector<9x8x4xbf16> to vector<1x8x4xbf16>
    %39 = vector.shape_cast %38 : vector<1x8x4xbf16> to vector<8x4xbf16>
    %cst_21 = arith.constant dense<0.000000e+00> : vector<8x256xf32>
    %40 = tpu.matmul %39, %37, %cst_21 {dimension_numbers = #tpu.dot_dimension_numbers<[1], [0], [0], [1], [0, 0, 1, 1], [], []>} : vector<8x4xbf16>, vector<4x256xbf16>, vector<8x256xf32> -> vector<8x256xf32>
    %41 = arith.addf %36, %40 : vector<8x256xf32>
    %c0_22 = arith.constant 0 : index
    %c129 = arith.constant 129 : index
    %42 = vector.load %arg7[%c0_22, %c129] : memref<4x512xbf16, #tpu.memory_space<vmem>>, vector<4x256xbf16>
    %43 = vector.broadcast %9 : vector<1x256xbf16> to vector<4x256xbf16>
    %44 = arith.mulf %42, %43 : vector<4x256xbf16>
    %45 = vector.extract_strided_slice %6 {offsets = [5, 0, 0], sizes = [1, 8, 4], strides = [1, 1, 1]} : vector<9x8x4xbf16> to vector<1x8x4xbf16>
    %46 = vector.shape_cast %45 : vector<1x8x4xbf16> to vector<8x4xbf16>
    %cst_23 = arith.constant dense<0.000000e+00> : vector<8x256xf32>
    %47 = tpu.matmul %46, %44, %cst_23 {dimension_numbers = #tpu.dot_dimension_numbers<[1], [0], [0], [1], [0, 0, 1, 1], [], []>} : vector<8x4xbf16>, vector<4x256xbf16>, vector<8x256xf32> -> vector<8x256xf32>
    %48 = arith.addf %41, %47 : vector<8x256xf32>
    %c0_24 = arith.constant 0 : index
    %c143 = arith.constant 143 : index
    %49 = vector.load %arg7[%c0_24, %c143] : memref<4x512xbf16, #tpu.memory_space<vmem>>, vector<4x256xbf16>
    %50 = vector.broadcast %8 : vector<1x256xbf16> to vector<4x256xbf16>
    %51 = arith.mulf %49, %50 : vector<4x256xbf16>
    %52 = vector.extract_strided_slice %6 {offsets = [6, 0, 0], sizes = [1, 8, 4], strides = [1, 1, 1]} : vector<9x8x4xbf16> to vector<1x8x4xbf16>
    %53 = vector.shape_cast %52 : vector<1x8x4xbf16> to vector<8x4xbf16>
    %cst_25 = arith.constant dense<0.000000e+00> : vector<8x256xf32>
    %54 = tpu.matmul %53, %51, %cst_25 {dimension_numbers = #tpu.dot_dimension_numbers<[1], [0], [0], [1], [0, 0, 1, 1], [], []>} : vector<8x4xbf16>, vector<4x256xbf16>, vector<8x256xf32> -> vector<8x256xf32>
    %55 = arith.addf %48, %54 : vector<8x256xf32>
    %c0_26 = arith.constant 0 : index
    %c144 = arith.constant 144 : index
    %56 = vector.load %arg7[%c0_26, %c144] : memref<4x512xbf16, #tpu.memory_space<vmem>>, vector<4x256xbf16>
    %57 = vector.extract_strided_slice %6 {offsets = [7, 0, 0], sizes = [1, 8, 4], strides = [1, 1, 1]} : vector<9x8x4xbf16> to vector<1x8x4xbf16>
    %58 = vector.shape_cast %57 : vector<1x8x4xbf16> to vector<8x4xbf16>
    %cst_27 = arith.constant dense<0.000000e+00> : vector<8x256xf32>
    %59 = tpu.matmul %58, %56, %cst_27 {dimension_numbers = #tpu.dot_dimension_numbers<[1], [0], [0], [1], [0, 0, 1, 1], [], []>} : vector<8x4xbf16>, vector<4x256xbf16>, vector<8x256xf32> -> vector<8x256xf32>
    %60 = arith.addf %55, %59 : vector<8x256xf32>
    %c0_28 = arith.constant 0 : index
    %c145 = arith.constant 145 : index
    %61 = vector.load %arg7[%c0_28, %c145] : memref<4x512xbf16, #tpu.memory_space<vmem>>, vector<4x256xbf16>
    %62 = vector.broadcast %9 : vector<1x256xbf16> to vector<4x256xbf16>
    %63 = arith.mulf %61, %62 : vector<4x256xbf16>
    %64 = vector.extract_strided_slice %6 {offsets = [8, 0, 0], sizes = [1, 8, 4], strides = [1, 1, 1]} : vector<9x8x4xbf16> to vector<1x8x4xbf16>
    %65 = vector.shape_cast %64 : vector<1x8x4xbf16> to vector<8x4xbf16>
    %cst_29 = arith.constant dense<0.000000e+00> : vector<8x256xf32>
    %66 = tpu.matmul %65, %63, %cst_29 {dimension_numbers = #tpu.dot_dimension_numbers<[1], [0], [0], [1], [0, 0, 1, 1], [], []>} : vector<8x4xbf16>, vector<4x256xbf16>, vector<8x256xf32> -> vector<8x256xf32>
    %67 = arith.addf %60, %66 : vector<8x256xf32>
    %c0_30 = arith.constant 0 : index
    %c0_31 = arith.constant 0 : index
    %68 = vector.load %arg3[%c0_30, %c0_31] : memref<8x1xf32, #tpu.memory_space<vmem>>, vector<8x1xf32>
    %69 = vector.broadcast %68 : vector<8x1xf32> to vector<8x256xf32>
    %70 = arith.addf %67, %69 : vector<8x256xf32>
    %71 = vector.extract_strided_slice %70 {offsets = [0, 0], sizes = [4, 256], strides = [1, 1]} : vector<8x256xf32> to vector<4x256xf32>
    %c0_32 = arith.constant 0 : index
    %c0_33 = arith.constant 0 : index
    %c0_34 = arith.constant 0 : index
    %72 = vector.load %arg5[%c0_32, %c0_33, %c0_34] : memref<1x4x256xf32, #tpu.memory_space<vmem>>, vector<1x4x256xf32>
    %73 = vector.shape_cast %72 : vector<1x4x256xf32> to vector<4x256xf32>
    %74 = vector.shape_cast %71 : vector<4x256xf32> to vector<1x4x256xf32>
    tpu.vector_store %arg5[%c0_32, %c0_33, %c0_34], %74 {strides = array<i32>} : memref<1x4x256xf32, #tpu.memory_space<vmem>>, vector<1x4x256xf32>,
    %75 = vector.extract_strided_slice %70 {offsets = [4, 0], sizes = [4, 256], strides = [1, 1]} : vector<8x256xf32> to vector<4x256xf32>
    %c0_35 = arith.constant 0 : index
    %c0_36 = arith.constant 0 : index
    %c0_37 = arith.constant 0 : index
    %76 = vector.load %arg6[%c0_35, %c0_36, %c0_37] : memref<1x4x256xf32, #tpu.memory_space<vmem>>, vector<1x4x256xf32>
    %77 = vector.shape_cast %76 : vector<1x4x256xf32> to vector<4x256xf32>
    %78 = vector.shape_cast %75 : vector<4x256xf32> to vector<1x4x256xf32>
    tpu.vector_store %arg6[%c0_35, %c0_36, %c0_37], %78 {strides = array<i32>} : memref<1x4x256xf32, #tpu.memory_space<vmem>>, vector<1x4x256xf32>,
    return
  }
  func.func @transform_0(%arg0: i32) -> (i32, i32, i32) {
    %c0_i32 = arith.constant 0 : i32
    %c0_i32_0 = arith.constant 0 : i32
    %c0_i32_1 = arith.constant 0 : i32
    return %arg0, %c0_i32, %c0_i32_0 : i32, i32, i32
  }
  func.func @transform_1(%arg0: i32) -> (i32, i32, i32) {
    %c0_i32 = arith.constant 0 : i32
    %c0_i32_0 = arith.constant 0 : i32
    %c0_i32_1 = arith.constant 0 : i32
    %c0_i32_2 = arith.constant 0 : i32
    return %c0_i32, %c0_i32_0, %c0_i32_1 : i32, i32, i32
  }
  func.func @transform_2(%arg0: i32) -> (i32, i32) {
    %c0_i32 = arith.constant 0 : i32
    %c0_i32_0 = arith.constant 0 : i32
    %c0_i32_1 = arith.constant 0 : i32
    return %c0_i32, %c0_i32_0 : i32, i32
  }
  func.func @transform_3(%arg0: i32) -> (i32, i32) {
    %c0_i32 = arith.constant 0 : i32
    %c0_i32_0 = arith.constant 0 : i32
    %c0_i32_1 = arith.constant 0 : i32
    return %c0_i32, %c0_i32_0 : i32, i32
  }
  func.func @transform_4(%arg0: i32) -> (i32, i32, i32) {
    %c0_i32 = arith.constant 0 : i32
    %c0_i32_0 = arith.constant 0 : i32
    %c0_i32_1 = arith.constant 0 : i32
    return %arg0, %c0_i32, %c0_i32_0 : i32, i32, i32
  }
  func.func @transform_5(%arg0: i32) -> (i32, i32, i32) {
    %c0_i32 = arith.constant 0 : i32
    %c0_i32_0 = arith.constant 0 : i32
    %c0_i32_1 = arith.constant 0 : i32
    return %arg0, %c0_i32, %c0_i32_0 : i32, i32, i32
  }
}

</mosaic_0001>

<llo_original>
// kernel: tpu_custom_call.1
$region0: #{tpu_custom_call.1}
  #allocation0 [shape = 'u32[]', space=smem, size = 0x4, offset = 0x4, fixed_abs, tag = 'smem constant byte address 0x4 - core index']
  #allocation1 [shape = 'u32[144,128]{1,0:T(1,128)}', space=vmem, size = 0x12000, scoped, tag = 'internal scratch']
  #allocation2 [shape = 'bf16[4,512]{1,0:T(4,128)(2,1)}', space=vmem, size = 0x1000, scoped, tag = 'scratch operand']
  %s0 = inlined_call_operand.vmem [shape: f32[2,4,256], index: 0, kind: input, shape index: {}]
  %s1 = inlined_call_operand.vmem [shape: bf16[9,8,4], index: 1, kind: input, shape index: {}]
  %s2 = inlined_call_operand.vmem [shape: f32[8,1], index: 2, kind: input, shape index: {}]
  %s3 = inlined_call_operand.vmem [shape: bf16[2,256], index: 3, kind: input, shape index: {}]
  %s4 = inlined_call_operand.hbm [shape: f32[2,4,256], index: 4, kind: output, shape index: {0}]
  %s5 = inlined_call_operand.hbm [shape: f32[2,4,256], index: 5, kind: output, shape index: {1}]
  %6 = xla_tuple %s4, %s5
  %s7 = sld [smem:[#allocation0]]
  $region57: #{tpu_custom_call.1} parent=0
    _
  %s9 = ssub.s32 1, %s7
  %s10 = scalar_select 0, %s9, %s7
  $region1: #{tpu_custom_call.1} parent=0
    #allocation3 [shape = 'u8[8192]{0}', space=vmem, size = 0x2000, scoped, tag = 'output window, operand 0']
    #allocation4 [shape = 's32[2]{0}', space=sflag, size = 0x8, scoped, tag = 'scoped memory for tpu_custom_call.1']
    #allocation5 [shape = 'u8[8192]{0}', space=vmem, size = 0x2000, scoped, tag = 'output window, operand 1']
    #allocation6 [shape = 's32[2]{0}', space=sflag, size = 0x8, scoped, tag = 'scoped memory for tpu_custom_call.1']
    %11 = vsyncpa [#allocation4], 0
    %s12 = scalar_lea.sflag [#allocation4], 1
    %13 = vsyncpa %s12, 0
    %14 = vsyncpa [#allocation6], 0
    %s15 = scalar_lea.sflag [#allocation6], 1
    %16 = vsyncpa %s15, 0
    loop: start=0, step=1, limit=4
    $region2: #{tpu_custom_call.1} parent=1 // loop_pre_header
      _
    $region3: #{tpu_custom_call.1} parent=1 // loop_header
      %s18 = sphi 0, %s22
      %p19 = scmp.ge.s32.totalorder %s18, 4
      %s28 = sphi 0, %s30
      %s31 = sphi 0, %s28
      %s32 = sphi 0, %s31
      %s48 = sphi 0, %s32
      %s52 = sphi 0, %s52
      %s54 = sphi 0, %s52
      %s55 = sphi 0, %s54
      %s69 = sphi 0, %s55
      %s73 = sphi 0, %s73
      %s75 = sphi 0, %s73
      %s76 = sphi 0, %s75
      %s90 = sphi 0, %s76
      %s94 = sphi 0, %s94
      %s96 = sphi 0, %s94
      %s97 = sphi 0, %s96
      %s111 = sphi 0, %s97
      %s117 = sphi 0, %s119
      %s120 = sphi 0, %s117
      %s121 = sphi 0, %s120
      %s137 = sphi 0, %s121
      %s143 = sphi 0, %s145
      %s146 = sphi 0, %s143
      %s147 = sphi 0, %s146
      %s163 = sphi 0, %s147
    $region4: #{tpu_custom_call.1} parent=1 // loop_header_branch
      %21 = sbr.rel (%p19) target = $region8
    $region5: #{tpu_custom_call.1} parent=1 // loop_body
      %s23 = ssub.s32 %s18, 1
      %s24 = ssub.s32 %s18, 2
      %s25 = sadd.s32 %s18, 1
      %s26 = ssub.s32 %s18, %s25
      %p27 = scmp.eq.s32.totalorder %s26, 0
      %s29 = sadd.s32 %s28, 1
      %s30 = scalar_select %p27, %s28, %s29
      %p33 = pneg %p27
      %p34 = scmp.eq.s32.totalorder %s18, 1
      %p35 = por %p33, %p34
      %p36 = scmp.ne.s32.totalorder %s28, %s31
      %p37 = scmp.eq.s32.totalorder %s18, 0
      %p38 = por %p36, %p37
      %p39 = scmp.ne.s32.totalorder %s28, %s31
      %p40 = scmp.eq.s32.totalorder %s23, 1
      %p41 = por %p39, %p40
      %p42 = scmp.ne.s32.totalorder %s31, %s32
      %p43 = scmp.eq.s32.totalorder %s23, 0
      %p44 = por %p42, %p43
      %p45 = scmp.ne.s32.totalorder %s31, %s32
      %p46 = scmp.eq.s32.totalorder %s24, 1
      %p47 = por %p45, %p46
      %p49 = scmp.ne.s32.totalorder %s32, %s48
      %p50 = scmp.eq.s32.totalorder %s24, 0
      %p51 = por %p49, %p50
      %s53 = sadd.s32 %s52, 1
      %p56 = scmp.eq.s32.totalorder %s18, 1
      %p57 = scmp.ne.s32.totalorder %s52, %s54
      %p58 = scmp.eq.s32.totalorder %s18, 0
      %p59 = por %p57, %p58
      %p60 = scmp.ne.s32.totalorder %s52, %s54
      %p61 = scmp.eq.s32.totalorder %s23, 1
      %p62 = por %p60, %p61
      %p63 = scmp.ne.s32.totalorder %s54, %s55
      %p64 = scmp.eq.s32.totalorder %s23, 0
      %p65 = por %p63, %p64
      %p66 = scmp.ne.s32.totalorder %s54, %s55
      %p67 = scmp.eq.s32.totalorder %s24, 1
      %p68 = por %p66, %p67
      %p70 = scmp.ne.s32.totalorder %s55, %s69
      %p71 = scmp.eq.s32.totalorder %s24, 0
      %p72 = por %p70, %p71
      %s74 = sadd.s32 %s73, 1
      %p77 = scmp.eq.s32.totalorder %s18, 1
      %p78 = scmp.ne.s32.totalorder %s73, %s75
      %p79 = scmp.eq.s32.totalorder %s18, 0
      %p80 = por %p78, %p79
      %p81 = scmp.ne.s32.totalorder %s73, %s75
      %p82 = scmp.eq.s32.totalorder %s23, 1
      %p83 = por %p81, %p82
      %p84 = scmp.ne.s32.totalorder %s75, %s76
      %p85 = scmp.eq.s32.totalorder %s23, 0
      %p86 = por %p84, %p85
      %p87 = scmp.ne.s32.totalorder %s75, %s76
      %p88 = scmp.eq.s32.totalorder %s24, 1
      %p89 = por %p87, %p88
      %p91 = scmp.ne.s32.totalorder %s76, %s90
      %p92 = scmp.eq.s32.totalorder %s24, 0
      %p93 = por %p91, %p92
      %s95 = sadd.s32 %s94, 1
      %p98 = scmp.eq.s32.totalorder %s18, 1
      %p99 = scmp.ne.s32.totalorder %s94, %s96
      %p100 = scmp.eq.s32.totalorder %s18, 0
      %p101 = por %p99, %p100
      %p102 = scmp.ne.s32.totalorder %s94, %s96
      %p103 = scmp.eq.s32.totalorder %s23, 1
      %p104 = por %p102, %p103
      %p105 = scmp.ne.s32.totalorder %s96, %s97
      %p106 = scmp.eq.s32.totalorder %s23, 0
      %p107 = por %p105, %p106
      %p108 = scmp.ne.s32.totalorder %s96, %s97
      %p109 = scmp.eq.s32.totalorder %s24, 1
      %p110 = por %p108, %p109
      %p112 = scmp.ne.s32.totalorder %s97, %s111
      %p113 = scmp.eq.s32.totalorder %s24, 0
      %p114 = por %p112, %p113
      %s115 = ssub.s32 %s18, %s25
      %p116 = scmp.eq.s32.totalorder %s115, 0
      %s118 = sadd.s32 %s117, 1
      %s119 = scalar_select %p116, %s117, %s118
      %p122 = pneg %p116
      %p123 = scmp.eq.s32.totalorder %s18, 1
      %p124 = por %p122, %p123
      %p125 = scmp.ne.s32.totalorder %s117, %s120
      %p126 = scmp.eq.s32.totalorder %s18, 0
      %p127 = por %p125, %p126
      %p128 = scmp.ne.s32.totalorder %s117, %s120
      %p129 = scmp.eq.s32.totalorder %s23, 1
      %p130 = por %p128, %p129
      %p131 = scmp.ne.s32.totalorder %s120, %s121
      %p132 = scmp.eq.s32.totalorder %s23, 0
      %p133 = por %p131, %p132
      %p134 = scmp.ne.s32.totalorder %s120, %s121
      %p135 = scmp.eq.s32.totalorder %s24, 1
      %p136 = por %p134, %p135
      %p138 = scmp.ne.s32.totalorder %s121, %s137
      %p139 = scmp.eq.s32.totalorder %s24, 0
      %p140 = por %p138, %p139
      %s141 = ssub.s32 %s18, %s25
      %p142 = scmp.eq.s32.totalorder %s141, 0
      %s144 = sadd.s32 %s143, 1
      %s145 = scalar_select %p142, %s143, %s144
      %p148 = pneg %p142
      %p149 = scmp.eq.s32.totalorder %s18, 1
      %p150 = por %p148, %p149
      %p151 = scmp.ne.s32.totalorder %s143, %s146
      %p152 = scmp.eq.s32.totalorder %s18, 0
      %p153 = por %p151, %p152
      %p154 = scmp.ne.s32.totalorder %s143, %s146
      %p155 = scmp.eq.s32.totalorder %s23, 1
      %p156 = por %p154, %p155
      %p157 = scmp.ne.s32.totalorder %s146, %s147
      %p158 = scmp.eq.s32.totalorder %s23, 0
      %p159 = por %p157, %p158
      %p160 = scmp.ne.s32.totalorder %s146, %s147
      %p161 = scmp.eq.s32.totalorder %s24, 1
      %p162 = por %p160, %p161
      %p164 = scmp.ne.s32.totalorder %s147, %s163
      %p165 = scmp.eq.s32.totalorder %s24, 0
      %p166 = por %p164, %p165
      %p167 = scmp.le.s32.totalorder 1, %s18
      %p168 = scmp.lt.s32.totalorder %s18, 3
      %p169 = pnand %p167, %p168
      %p170 = pneg %p169
      // Predicated region
      $region9: #{tpu_custom_call.1} parent=5 // pred_check
        _
      $region10: #{tpu_custom_call.1} parent=5 // pred_check_branch
        %172 = sbr.rel (%p169) target = $region12
      $region11: #{tpu_custom_call.1} parent=5 // pred_region
        %s173 = ssub.s32 %s18, 1
        // Predicated region
        $region13: #{tpu_custom_call.1} parent=11 // pred_check
          %p174 = pneg %p65
        $region14: #{tpu_custom_call.1} parent=11 // pred_check_branch
          %176 = sbr.rel (%p174) target = $region16
        $region15: #{tpu_custom_call.1} parent=11 // pred_region
          _
        $region16: #{tpu_custom_call.1} parent=11 // pred_fallthru
          _
        // Predicated region
        $region17: #{tpu_custom_call.1} parent=11 // pred_check
          %p177 = pneg %p86
        $region18: #{tpu_custom_call.1} parent=11 // pred_check_branch
          %179 = sbr.rel (%p177) target = $region20
        $region19: #{tpu_custom_call.1} parent=11 // pred_region
          _
        $region20: #{tpu_custom_call.1} parent=11 // pred_fallthru
          _
        // Predicated region
        $region21: #{tpu_custom_call.1} parent=11 // pred_check
          %p180 = pneg %p107
        $region22: #{tpu_custom_call.1} parent=11 // pred_check_branch
          %182 = sbr.rel (%p180) target = $region24
        $region23: #{tpu_custom_call.1} parent=11 // pred_region
          _
        $region24: #{tpu_custom_call.1} parent=11 // pred_fallthru
          _
      $region12: #{tpu_custom_call.1} parent=5 // pred_fallthru
        _
      %p183 = scmp.lt.s32.totalorder %s18, 2
      // Predicated region
      $region25: #{tpu_custom_call.1} parent=5 // pred_check
        %p184 = pneg %p183
      $region26: #{tpu_custom_call.1} parent=5 // pred_check_branch
        %186 = sbr.rel (%p184) target = $region28
      $region27: #{tpu_custom_call.1} parent=5 // pred_region
        // Predicated region
        $region29: #{tpu_custom_call.1} parent=27 // pred_check
          %p187 = pneg %p38
        $region30: #{tpu_custom_call.1} parent=27 // pred_check_branch
          %189 = sbr.rel (%p187) target = $region32
        $region31: #{tpu_custom_call.1} parent=27 // pred_region
          %p190 = scmp.lt.s32.totalorder %s18, 1
          %s191 = scalar_select %p190, %s18, 1
          %s192 = smul.addr %s191, 2
          %s193 = smul.addr %s192, 4
          %s194 = scalar_lea.vmem %s0, %s193
        $region32: #{tpu_custom_call.1} parent=27 // pred_fallthru
          _
      $region28: #{tpu_custom_call.1} parent=5 // pred_fallthru
        _
      %p195 = scmp.le.s32.totalorder 1, %s18
      %p196 = scmp.lt.s32.totalorder %s18, 3
      %p197 = pnand %p195, %p196
      %p198 = pneg %p197
      // Predicated region
      $region33: #{tpu_custom_call.1} parent=5 // pred_check
        _
      $region34: #{tpu_custom_call.1} parent=5 // pred_check_branch
        %200 = sbr.rel (%p197) target = $region36
      $region35: #{tpu_custom_call.1} parent=5 // pred_region
        %s201 = ssub.s32 %s18, 1
        %p202 = scmp.lt.s32.totalorder %s23, 1
        %s203 = scalar_select %p202, %s23, 1
        %s204 = smul.addr %s203, 2
        %s205 = smul.addr %s204, 4
        %s206 = scalar_lea.vmem %s0, %s205
        %p207 = pneg %p44
        %p208 = pneg %p41
        %p209 = pneg %p65
        %p210 = pneg %p62
        %p211 = pneg %p86
        %p212 = pneg %p83
        %p213 = pneg %p107
        %p214 = pneg %p104
        %p215 = pneg %p133
        %p216 = pneg %p130
        %s217 = sand.u32 %s120, 1
        %s218 = scalar_lea.sflag [#allocation4], %s217
        %s219 = sand.u32 %s120, 1
        %s220 = smul.addr %s219, 8
        %s221 = scalar_lea.vmem [#allocation3], %s220
        %p222 = pneg %p159
        %p223 = pneg %p156
        %s224 = sand.u32 %s146, 1
        %s225 = scalar_lea.sflag [#allocation6], %s224
        %s226 = sand.u32 %s146, 1
        %s227 = smul.addr %s226, 8
        %s228 = scalar_lea.vmem [#allocation5], %s227
        %p229 = scmp.lt.s32.totalorder %s23, 1
        %s230 = scalar_select %p229, %s23, 1
        %s231 = smul.addr %s230, 2
        %s232 = smul.addr %s231, 4
        %s233 = scalar_lea.vmem %s0, %s232
        %235 = vst [vmem:[#allocation2] sm:$0xff] 0
        %v236 = vld [vmem:[%s233] sm:$0xff]
        %v238 = vcombine.high %v236, %v236
        %v240 = vpack.c.bf16 %v236, %v236
        %v241 = vpack.c.bf16 %v238, %v238
        %v244 = vcombine.low %v240, %v241
        %v246 = vunpack.c.l.s4 1983009808
        %v247 = vunpack.c.0.s8 %v246
        %v248 = vlaneseq
        %v249 = vshrl.u32 %v248, 7
        %v250 = vsub.s32 %v247, %v249
        %v251 = vrot.slane %v244, %v250
        %253 = vst [vmem:[#allocation2 + $0x2] sm:$0xf] %v251
        %v254 = vld [vmem:[%s1] sm:$0xf]
        %v255 = vld [vmem:[%s1 + $0x4] sm:$0xf]
        %v256 = vld [vmem:[%s1 + $0x8] sm:$0xf]
        %v257 = vld [vmem:[%s1 + $0xc] sm:$0xf]
        %v258 = vld [vmem:[%s1 + $0x10] sm:$0xf]
        %v259 = vld [vmem:[%s1 + $0x14] sm:$0xf]
        %v260 = vld [vmem:[%s1 + $0x18] sm:$0xf]
        %v261 = vld [vmem:[%s1 + $0x1c] sm:$0xf]
        %v262 = vld [vmem:[%s1 + $0x20] sm:$0xf]
        %v263 = vld [vmem:[%s3] sm:$0x3]
        %v264 = vld [vmem:[#allocation2] sm:$0x3f]
        %v267 = vunpack.c.l.s4 1966171168
        %v268 = vunpack.c.0.s8 %v267
        %v269 = vlaneseq
        %v270 = vshrl.u32 %v269, 7
        %v271 = vsub.s32 %v268, %v270
        %v272 = vrot.slane %v263, %v271
        %v273 = vcombine.high %v272, %v272
        %v275 = vunpack.c.l.s4 1966171168
        %v276 = vunpack.c.0.s8 %v275
        %v277 = vlaneseq
        %v278 = vshrl.u32 %v277, 7
        %v279 = vsub.s32 %v276, %v278
        %v280 = vrot.slane %v272, %v279
        %v282 = vunpack.c.l.s4 1966171168
        %v283 = vunpack.c.0.s8 %v282
        %v284 = vlaneseq
        %v285 = vshrl.u32 %v284, 7
        %v286 = vsub.s32 %v283, %v285
        %v287 = vrot.slane %v273, %v286
        %v289 = vpack.i.b16 %v280, %v280
        %v291 = vlaneseq
        %v292 = vshrl.u32 %v291, 7
        %v293 = vsub.s32 0, %v292
        %v294 = vrot.slane %v289, %v293
        %v296 = vpack.i.b16 %v287, %v287
        %v298 = vlaneseq
        %v299 = vshrl.u32 %v298, 7
        %v300 = vsub.s32 0, %v299
        %v301 = vrot.slane %v296, %v300
        %v304 = vcombine.low %v294, %v301
        %v306 = vunpack.c.l.s4 1983009808
        %v307 = vunpack.c.0.s8 %v306
        %v308 = vlaneseq
        %v309 = vshrl.u32 %v308, 7
        %v310 = vsub.s32 %v307, %v309
        %v311 = vrot.slane %v304, %v310
        %312 = vrot.lane.b32.xlu0 %v311, 111
        %v313 = vpop.permute.xlu0 %312
        %v314 = vrot.slane %v313, 6
        %vm315 = vcmask 908288
        %v316 = vsel %vm315, %v314, %v313
        %v318 = vmul.bf16 %v264, %v316
        %v320 = vcombine.high %v264, %v264
        %v322 = vunpack.c.l.s4 1983009808
        %v323 = vunpack.c.0.s8 %v322
        %v324 = vlaneseq
        %v325 = vshrl.u32 %v324, 7
        %v326 = vsub.s32 %v323, %v325
        %v327 = vrot.slane %v264, %v326
        %v329 = vunpack.c.l.s4 1983009808
        %v330 = vunpack.c.0.s8 %v329
        %v331 = vlaneseq
        %v332 = vshrl.u32 %v331, 7
        %v333 = vsub.s32 %v330, %v332
        %v334 = vrot.slane %v320, %v333
        %v335 = vcombine.high %v327, %v327
        %336 = vrot.lane.b32.xlu0 %v327, 16
        %v337 = vpop.permute.xlu0 %336
        %338 = vrot.lane.b32.xlu0 %v335, 16
        %v339 = vpop.permute.xlu0 %338
        %340 = vrot.lane.b32.xlu0 %v334, 16
        %v341 = vpop.permute.xlu0 %340
        %vm342 = vcmask 130048
        %v343 = vsel %vm342, %v337, %v339
        %v344 = vsel %vm342, %v339, %v341
        %vm345 = vcmask 31744
        %v347 = vsel %vm345, %v255, 0
        %vm349 = vcmask 1041408
        %v351 = vsel %vm349, %v343, 0
        %v354 = vsel %vm349, %v344, 0
        %356 = vmatprep.subr.bf16.mxu0 0
        %357 = vmatpush1.bf16.msra.mxu0 0
        %358 = vmatprep.subr.bf16.mxu0 0
        %359 = vmatpush1.bf16.msra.mxu0 0
        %360 = vmatprep.subr.bf16.mxu0 0
        %361 = vmatpush1.bf16.msra.mxu0 0
        %362 = vmatprep.subr.bf16.mxu0 0
        %363 = vmatpush1.bf16.msra.mxu0 0
        %364 = vmatprep.subr.bf16.mxu0 0
        %365 = vmatpush1.bf16.msra.mxu0 0
        %366 = vmatprep.subr.bf16.mxu0 0
        %367 = vmatpush1.bf16.msra.mxu0 0
        %368 = vmatprep.subr.bf16.mxu0 0
        %369 = vmatpush1.bf16.msra.mxu0 0
        %370 = vmatprep.subr.bf16.mxu0 %v354
        %371 = vmatpush1.bf16.msra.mxu0 %v351
        %372 = vmatprep.subr.bf16.mxu0 0
        %373 = vmatpush2.bf16.msra.mxu0 0
        %374 = vmatprep.subr.bf16.mxu0 0
        %375 = vmatpush2.bf16.msra.mxu0 0
        %376 = vmatprep.subr.bf16.mxu0 0
        %377 = vmatpush2.bf16.msra.mxu0 0
        %378 = vmatprep.subr.bf16.mxu0 0
        %379 = vmatpush2.bf16.msra.mxu0 0
        %380 = vmatprep.subr.bf16.mxu0 0
        %381 = vmatpush2.bf16.msra.mxu0 0
        %382 = vmatprep.subr.bf16.mxu0 0
        %383 = vmatpush2.bf16.msra.mxu0 0
        %384 = vmatprep.subr.bf16.mxu0 0
        %385 = vmatpush2.bf16.msra.mxu0 0
        %386 = vmatprep.subr.bf16.mxu0 0
        %387 = vmatpush2.bf16.msra.mxu0 0
        %388 = vmatprep.mubr.bf16.mxu0 0
        %389 = vmatmul.mubr.bf16.gmra.mxu0 %v347
        %v390 = vpop.f32.mrf.mxu0
        %v391 = vadd.f32 0.0, %v390
        %v392 = vpop.f32.mrf.mxu0
        %v393 = vadd.f32 0.0, %v392
        %v394 = vpop.f32.mrf.mxu0
        %v395 = vpop.f32.mrf.mxu0
        %396 = vdwg.mxu0
        %v398 = vcombine.high %v318, %v318
        %v400 = vunpack.c.l.s4 1983009808
        %v401 = vunpack.c.0.s8 %v400
        %v402 = vlaneseq
        %v403 = vshrl.u32 %v402, 7
        %v404 = vsub.s32 %v401, %v403
        %v405 = vrot.slane %v318, %v404
        %v407 = vunpack.c.l.s4 1983009808
        %v408 = vunpack.c.0.s8 %v407
        %v409 = vlaneseq
        %v410 = vshrl.u32 %v409, 7
        %v411 = vsub.s32 %v408, %v410
        %v412 = vrot.slane %v398, %v411
        %v413 = vcombine.high %v405, %v405
        %414 = vrot.lane.b32.xlu0 %v405, 17
        %v415 = vpop.permute.xlu0 %414
        %416 = vrot.lane.b32.xlu0 %v413, 17
        %v417 = vpop.permute.xlu0 %416
        %418 = vrot.lane.b32.xlu0 %v412, 17
        %v419 = vpop.permute.xlu0 %418
        %vm420 = vcmask 138240
        %v421 = vsel %vm420, %v415, %v417
        %v422 = vsel %vm420, %v417, %v419
        %v424 = vsel %vm345, %v254, 0
        %v427 = vsel %vm349, %v421, 0
        %v430 = vsel %vm349, %v422, 0
        %432 = vmatprep.subr.bf16.mxu0 0
        %433 = vmatpush1.bf16.msra.mxu0 0
        %434 = vmatprep.subr.bf16.mxu0 0
        %435 = vmatpush1.bf16.msra.mxu0 0
        %436 = vmatprep.subr.bf16.mxu0 0
        %437 = vmatpush1.bf16.msra.mxu0 0
        %438 = vmatprep.subr.bf16.mxu0 0
        %439 = vmatpush1.bf16.msra.mxu0 0
        %440 = vmatprep.subr.bf16.mxu0 0
        %441 = vmatpush1.bf16.msra.mxu0 0
        %442 = vmatprep.subr.bf16.mxu0 0
        %443 = vmatpush1.bf16.msra.mxu0 0
        %444 = vmatprep.subr.bf16.mxu0 0
        %445 = vmatpush1.bf16.msra.mxu0 0
        %446 = vmatprep.subr.bf16.mxu0 %v430
        %447 = vmatpush1.bf16.msra.mxu0 %v427
        %448 = vmatprep.subr.bf16.mxu0 0
        %449 = vmatpush2.bf16.msra.mxu0 0
        %450 = vmatprep.subr.bf16.mxu0 0
        %451 = vmatpush2.bf16.msra.mxu0 0
        %452 = vmatprep.subr.bf16.mxu0 0
        %453 = vmatpush2.bf16.msra.mxu0 0
        %454 = vmatprep.subr.bf16.mxu0 0
        %455 = vmatpush2.bf16.msra.mxu0 0
        %456 = vmatprep.subr.bf16.mxu0 0
        %457 = vmatpush2.bf16.msra.mxu0 0
        %458 = vmatprep.subr.bf16.mxu0 0
        %459 = vmatpush2.bf16.msra.mxu0 0
        %460 = vmatprep.subr.bf16.mxu0 0
        %461 = vmatpush2.bf16.msra.mxu0 0
        %462 = vmatprep.subr.bf16.mxu0 0
        %463 = vmatpush2.bf16.msra.mxu0 0
        %464 = vmatprep.mubr.bf16.mxu0 0
        %465 = vmatmul.mubr.bf16.gmra.mxu0 %v424
        %v466 = vpop.f32.mrf.mxu0
        %v467 = vadd.f32 %v391, %v466
        %v468 = vpop.f32.mrf.mxu0
        %v469 = vadd.f32 %v393, %v468
        %v470 = vpop.f32.mrf.mxu0
        %v471 = vpop.f32.mrf.mxu0
        %472 = vdwg.mxu0
        %v473 = vld [vmem:[#allocation2] sm:$0x3f]
        %v474 = vshrl.u32 %v280, 16
        %v475 = vpack.i.b16 %v474, %v474
        %v477 = vlaneseq
        %v478 = vshrl.u32 %v477, 7
        %v479 = vsub.s32 0, %v478
        %v480 = vrot.slane %v475, %v479
        %v481 = vshrl.u32 %v287, 16
        %v482 = vpack.i.b16 %v481, %v481
        %v484 = vlaneseq
        %v485 = vshrl.u32 %v484, 7
        %v486 = vsub.s32 0, %v485
        %v487 = vrot.slane %v482, %v486
        %v490 = vcombine.low %v480, %v487
        %v492 = vunpack.c.l.s4 1983009808
        %v493 = vunpack.c.0.s8 %v492
        %v494 = vlaneseq
        %v495 = vshrl.u32 %v494, 7
        %v496 = vsub.s32 %v493, %v495
        %v497 = vrot.slane %v490, %v496
        %498 = vrot.lane.b32.xlu0 %v497, 113
        %v499 = vpop.permute.xlu0 %498
        %v500 = vrot.slane %v499, 6
        %vm501 = vcmask 924672
        %v502 = vsel %vm501, %v500, %v499
        %v504 = vmul.bf16 %v473, %v502
        %v506 = vcombine.high %v504, %v504
        %v508 = vunpack.c.l.s4 1983009808
        %v509 = vunpack.c.0.s8 %v508
        %v510 = vlaneseq
        %v511 = vshrl.u32 %v510, 7
        %v512 = vsub.s32 %v509, %v511
        %v513 = vrot.slane %v504, %v512
        %v515 = vunpack.c.l.s4 1983009808
        %v516 = vunpack.c.0.s8 %v515
        %v517 = vlaneseq
        %v518 = vshrl.u32 %v517, 7
        %v519 = vsub.s32 %v516, %v518
        %v520 = vrot.slane %v506, %v519
        %v521 = vcombine.high %v513, %v513
        %522 = vrot.lane.b32.xlu0 %v513, 15
        %v523 = vpop.permute.xlu0 %522
        %524 = vrot.lane.b32.xlu0 %v521, 15
        %v525 = vpop.permute.xlu0 %524
        %526 = vrot.lane.b32.xlu0 %v520, 15
        %v527 = vpop.permute.xlu0 %526
        %vm528 = vcmask 121856
        %v529 = vsel %vm528, %v523, %v525
        %v530 = vsel %vm528, %v525, %v527
        %v532 = vsel %vm345, %v256, 0
        %v535 = vsel %vm349, %v529, 0
        %v538 = vsel %vm349, %v530, 0
        %540 = vmatprep.subr.bf16.mxu0 0
        %541 = vmatpush1.bf16.msra.mxu0 0
        %542 = vmatprep.subr.bf16.mxu0 0
        %543 = vmatpush1.bf16.msra.mxu0 0
        %544 = vmatprep.subr.bf16.mxu0 0
        %545 = vmatpush1.bf16.msra.mxu0 0
        %546 = vmatprep.subr.bf16.mxu0 0
        %547 = vmatpush1.bf16.msra.mxu0 0
        %548 = vmatprep.subr.bf16.mxu0 0
        %549 = vmatpush1.bf16.msra.mxu0 0
        %550 = vmatprep.subr.bf16.mxu0 0
        %551 = vmatpush1.bf16.msra.mxu0 0
        %552 = vmatprep.subr.bf16.mxu0 0
        %553 = vmatpush1.bf16.msra.mxu0 0
        %554 = vmatprep.subr.bf16.mxu0 %v538
        %555 = vmatpush1.bf16.msra.mxu0 %v535
        %556 = vmatprep.subr.bf16.mxu0 0
        %557 = vmatpush2.bf16.msra.mxu0 0
        %558 = vmatprep.subr.bf16.mxu0 0
        %559 = vmatpush2.bf16.msra.mxu0 0
        %560 = vmatprep.subr.bf16.mxu0 0
        %561 = vmatpush2.bf16.msra.mxu0 0
        %562 = vmatprep.subr.bf16.mxu0 0
        %563 = vmatpush2.bf16.msra.mxu0 0
        %564 = vmatprep.subr.bf16.mxu0 0
        %565 = vmatpush2.bf16.msra.mxu0 0
        %566 = vmatprep.subr.bf16.mxu0 0
        %567 = vmatpush2.bf16.msra.mxu0 0
        %568 = vmatprep.subr.bf16.mxu0 0
        %569 = vmatpush2.bf16.msra.mxu0 0
        %570 = vmatprep.subr.bf16.mxu0 0
        %571 = vmatpush2.bf16.msra.mxu0 0
        %572 = vmatprep.mubr.bf16.mxu0 0
        %573 = vmatmul.mubr.bf16.gmra.mxu0 %v532
        %v574 = vpop.f32.mrf.mxu0
        %v575 = vadd.f32 0.0, %v574
        %v576 = vpop.f32.mrf.mxu0
        %v577 = vadd.f32 0.0, %v576
        %v578 = vpop.f32.mrf.mxu0
        %v579 = vpop.f32.mrf.mxu0
        %580 = vdwg.mxu0
        %v581 = vadd.f32 %v467, %v575
        %v582 = vadd.f32 %v469, %v577
        %v583 = vld [vmem:[#allocation2] sm:$0x3f]
        %584 = vrot.lane.b32.xlu0 %v311, 127
        %v585 = vpop.permute.xlu0 %584
        %v586 = vrot.slane %v585, 6
        %vm587 = vcmask 1039360
        %v588 = vsel %vm587, %v586, %v585
        %v590 = vmul.bf16 %v583, %v588
        %v592 = vcombine.high %v590, %v590
        %v594 = vunpack.c.l.s4 1983009808
        %v595 = vunpack.c.0.s8 %v594
        %v596 = vlaneseq
        %v597 = vshrl.u32 %v596, 7
        %v598 = vsub.s32 %v595, %v597
        %v599 = vrot.slane %v590, %v598
        %v601 = vunpack.c.l.s4 1983009808
        %v602 = vunpack.c.0.s8 %v601
        %v603 = vlaneseq
        %v604 = vshrl.u32 %v603, 7
        %v605 = vsub.s32 %v602, %v604
        %v606 = vrot.slane %v592, %v605
        %v607 = vcombine.high %v599, %v599
        %608 = vrot.lane.b32.xlu0 %v599, 1
        %v609 = vpop.permute.xlu0 %608
        %610 = vrot.lane.b32.xlu0 %v607, 1
        %v611 = vpop.permute.xlu0 %610
        %612 = vrot.lane.b32.xlu0 %v606, 1
        %v613 = vpop.permute.xlu0 %612
        %vm614 = vcmask 7168
        %v615 = vsel %vm614, %v609, %v611
        %v616 = vsel %vm614, %v611, %v613
        %v618 = vsel %vm345, %v257, 0
        %v621 = vsel %vm349, %v615, 0
        %v624 = vsel %vm349, %v616, 0
        %626 = vmatprep.subr.bf16.mxu0 0
        %627 = vmatpush1.bf16.msra.mxu0 0
        %628 = vmatprep.subr.bf16.mxu0 0
        %629 = vmatpush1.bf16.msra.mxu0 0
        %630 = vmatprep.subr.bf16.mxu0 0
        %631 = vmatpush1.bf16.msra.mxu0 0
        %632 = vmatprep.subr.bf16.mxu0 0
        %633 = vmatpush1.bf16.msra.mxu0 0
        %634 = vmatprep.subr.bf16.mxu0 0
        %635 = vmatpush1.bf16.msra.mxu0 0
        %636 = vmatprep.subr.bf16.mxu0 0
        %637 = vmatpush1.bf16.msra.mxu0 0
        %638 = vmatprep.subr.bf16.mxu0 0
        %639 = vmatpush1.bf16.msra.mxu0 0
        %640 = vmatprep.subr.bf16.mxu0 %v624
        %641 = vmatpush1.bf16.msra.mxu0 %v621
        %642 = vmatprep.subr.bf16.mxu0 0
        %643 = vmatpush2.bf16.msra.mxu0 0
        %644 = vmatprep.subr.bf16.mxu0 0
        %645 = vmatpush2.bf16.msra.mxu0 0
        %646 = vmatprep.subr.bf16.mxu0 0
        %647 = vmatpush2.bf16.msra.mxu0 0
        %648 = vmatprep.subr.bf16.mxu0 0
        %649 = vmatpush2.bf16.msra.mxu0 0
        %650 = vmatprep.subr.bf16.mxu0 0
        %651 = vmatpush2.bf16.msra.mxu0 0
        %652 = vmatprep.subr.bf16.mxu0 0
        %653 = vmatpush2.bf16.msra.mxu0 0
        %654 = vmatprep.subr.bf16.mxu0 0
        %655 = vmatpush2.bf16.msra.mxu0 0
        %656 = vmatprep.subr.bf16.mxu0 0
        %657 = vmatpush2.bf16.msra.mxu0 0
        %658 = vmatprep.mubr.bf16.mxu0 0
        %659 = vmatmul.mubr.bf16.gmra.mxu0 %v618
        %v660 = vpop.f32.mrf.mxu0
        %v661 = vadd.f32 0.0, %v660
        %v662 = vpop.f32.mrf.mxu0
        %v663 = vadd.f32 0.0, %v662
        %v664 = vpop.f32.mrf.mxu0
        %v665 = vpop.f32.mrf.mxu0
        %666 = vdwg.mxu0
        %v667 = vadd.f32 %v581, %v661
        %v668 = vadd.f32 %v582, %v663
        %v669 = vld [vmem:[#allocation2 + $0x2] sm:$0xf]
        %v672 = vunpack.c.l.s4 1983009808
        %v673 = vunpack.c.0.s8 %v672
        %v674 = vlaneseq
        %v675 = vshrl.u32 %v674, 7
        %v676 = vsub.s32 %v673, %v675
        %v677 = vrot.slane %v669, %v676
        %v678 = vcombine.high %v677, %v677
        %v680 = vsel %vm345, %v258, 0
        %v683 = vsel %vm349, %v677, 0
        %v686 = vsel %vm349, %v678, 0
        %688 = vmatprep.subr.bf16.mxu0 0
        %689 = vmatpush1.bf16.msra.mxu0 0
        %690 = vmatprep.subr.bf16.mxu0 0
        %691 = vmatpush1.bf16.msra.mxu0 0
        %692 = vmatprep.subr.bf16.mxu0 0
        %693 = vmatpush1.bf16.msra.mxu0 0
        %694 = vmatprep.subr.bf16.mxu0 0
        %695 = vmatpush1.bf16.msra.mxu0 0
        %696 = vmatprep.subr.bf16.mxu0 0
        %697 = vmatpush1.bf16.msra.mxu0 0
        %698 = vmatprep.subr.bf16.mxu0 0
        %699 = vmatpush1.bf16.msra.mxu0 0
        %700 = vmatprep.subr.bf16.mxu0 0
        %701 = vmatpush1.bf16.msra.mxu0 0
        %702 = vmatprep.subr.bf16.mxu0 %v686
        %703 = vmatpush1.bf16.msra.mxu0 %v683
        %704 = vmatprep.subr.bf16.mxu0 0
        %705 = vmatpush2.bf16.msra.mxu0 0
        %706 = vmatprep.subr.bf16.mxu0 0
        %707 = vmatpush2.bf16.msra.mxu0 0
        %708 = vmatprep.subr.bf16.mxu0 0
        %709 = vmatpush2.bf16.msra.mxu0 0
        %710 = vmatprep.subr.bf16.mxu0 0
        %711 = vmatpush2.bf16.msra.mxu0 0
        %712 = vmatprep.subr.bf16.mxu0 0
        %713 = vmatpush2.bf16.msra.mxu0 0
        %714 = vmatprep.subr.bf16.mxu0 0
        %715 = vmatpush2.bf16.msra.mxu0 0
        %716 = vmatprep.subr.bf16.mxu0 0
        %717 = vmatpush2.bf16.msra.mxu0 0
        %718 = vmatprep.subr.bf16.mxu0 0
        %719 = vmatpush2.bf16.msra.mxu0 0
        %720 = vmatprep.mubr.bf16.mxu0 0
        %721 = vmatmul.mubr.bf16.gmra.mxu0 %v680
        %v722 = vpop.f32.mrf.mxu0
        %v723 = vadd.f32 0.0, %v722
        %v724 = vpop.f32.mrf.mxu0
        %v725 = vadd.f32 0.0, %v724
        %v726 = vpop.f32.mrf.mxu0
        %v727 = vpop.f32.mrf.mxu0
        %728 = vdwg.mxu0
        %v729 = vadd.f32 %v667, %v723
        %v730 = vadd.f32 %v668, %v725
        %v731 = vld [vmem:[#allocation2 + $0x2] sm:$0x3f]
        %732 = vrot.lane.b32.xlu0 %v497, 1
        %v733 = vpop.permute.xlu0 %732
        %v734 = vrot.slane %v733, 6
        %v735 = vsel %vm614, %v734, %v733
        %v737 = vmul.bf16 %v731, %v735
        %v739 = vcombine.high %v737, %v737
        %v741 = vunpack.c.l.s4 1983009808
        %v742 = vunpack.c.0.s8 %v741
        %v743 = vlaneseq
        %v744 = vshrl.u32 %v743, 7
        %v745 = vsub.s32 %v742, %v744
        %v746 = vrot.slane %v737, %v745
        %v748 = vunpack.c.l.s4 1983009808
        %v749 = vunpack.c.0.s8 %v748
        %v750 = vlaneseq
        %v751 = vshrl.u32 %v750, 7
        %v752 = vsub.s32 %v749, %v751
        %v753 = vrot.slane %v739, %v752
        %v754 = vcombine.high %v746, %v746
        %755 = vrot.lane.b32.xlu0 %v746, 127
        %v756 = vpop.permute.xlu0 %755
        %757 = vrot.lane.b32.xlu0 %v754, 127
        %v758 = vpop.permute.xlu0 %757
        %759 = vrot.lane.b32.xlu0 %v753, 127
        %v760 = vpop.permute.xlu0 %759
        %v761 = vsel %vm587, %v756, %v758
        %v762 = vsel %vm587, %v758, %v760
        %v764 = vsel %vm345, %v259, 0
        %v767 = vsel %vm349, %v761, 0
        %v770 = vsel %vm349, %v762, 0
        %772 = vmatprep.subr.bf16.mxu0 0
        %773 = vmatpush1.bf16.msra.mxu0 0
        %774 = vmatprep.subr.bf16.mxu0 0
        %775 = vmatpush1.bf16.msra.mxu0 0
        %776 = vmatprep.subr.bf16.mxu0 0
        %777 = vmatpush1.bf16.msra.mxu0 0
        %778 = vmatprep.subr.bf16.mxu0 0
        %779 = vmatpush1.bf16.msra.mxu0 0
        %780 = vmatprep.subr.bf16.mxu0 0
        %781 = vmatpush1.bf16.msra.mxu0 0
        %782 = vmatprep.subr.bf16.mxu0 0
        %783 = vmatpush1.bf16.msra.mxu0 0
        %784 = vmatprep.subr.bf16.mxu0 0
        %785 = vmatpush1.bf16.msra.mxu0 0
        %786 = vmatprep.subr.bf16.mxu0 %v770
        %787 = vmatpush1.bf16.msra.mxu0 %v767
        %788 = vmatprep.subr.bf16.mxu0 0
        %789 = vmatpush2.bf16.msra.mxu0 0
        %790 = vmatprep.subr.bf16.mxu0 0
        %791 = vmatpush2.bf16.msra.mxu0 0
        %792 = vmatprep.subr.bf16.mxu0 0
        %793 = vmatpush2.bf16.msra.mxu0 0
        %794 = vmatprep.subr.bf16.mxu0 0
        %795 = vmatpush2.bf16.msra.mxu0 0
        %796 = vmatprep.subr.bf16.mxu0 0
        %797 = vmatpush2.bf16.msra.mxu0 0
        %798 = vmatprep.subr.bf16.mxu0 0
        %799 = vmatpush2.bf16.msra.mxu0 0
        %800 = vmatprep.subr.bf16.mxu0 0
        %801 = vmatpush2.bf16.msra.mxu0 0
        %802 = vmatprep.subr.bf16.mxu0 0
        %803 = vmatpush2.bf16.msra.mxu0 0
        %804 = vmatprep.mubr.bf16.mxu0 0
        %805 = vmatmul.mubr.bf16.gmra.mxu0 %v764
        %v806 = vpop.f32.mrf.mxu0
        %v807 = vadd.f32 0.0, %v806
        %v808 = vpop.f32.mrf.mxu0
        %v809 = vadd.f32 0.0, %v808
        %v810 = vpop.f32.mrf.mxu0
        %v811 = vpop.f32.mrf.mxu0
        %812 = vdwg.mxu0
        %v813 = vadd.f32 %v729, %v807
        %v814 = vadd.f32 %v730, %v809
        %v815 = vld [vmem:[#allocation2 + $0x2] sm:$0x3f]
        %816 = vrot.lane.b32.xlu0 %v311, 15
        %v817 = vpop.permute.xlu0 %816
        %v818 = vrot.slane %v817, 6
        %v819 = vsel %vm528, %v818, %v817
        %v821 = vmul.bf16 %v815, %v819
        %v823 = vcombine.high %v821, %v821
        %v825 = vunpack.c.l.s4 1983009808
        %v826 = vunpack.c.0.s8 %v825
        %v827 = vlaneseq
        %v828 = vshrl.u32 %v827, 7
        %v829 = vsub.s32 %v826, %v828
        %v830 = vrot.slane %v821, %v829
        %v832 = vunpack.c.l.s4 1983009808
        %v833 = vunpack.c.0.s8 %v832
        %v834 = vlaneseq
        %v835 = vshrl.u32 %v834, 7
        %v836 = vsub.s32 %v833, %v835
        %v837 = vrot.slane %v823, %v836
        %v838 = vcombine.high %v830, %v830
        %839 = vrot.lane.b32.xlu0 %v830, 113
        %v840 = vpop.permute.xlu0 %839
        %841 = vrot.lane.b32.xlu0 %v838, 113
        %v842 = vpop.permute.xlu0 %841
        %843 = vrot.lane.b32.xlu0 %v837, 113
        %v844 = vpop.permute.xlu0 %843
        %v845 = vsel %vm501, %v840, %v842
        %v846 = vsel %vm501, %v842, %v844
        %v848 = vsel %vm345, %v260, 0
        %v851 = vsel %vm349, %v845, 0
        %v854 = vsel %vm349, %v846, 0
        %856 = vmatprep.subr.bf16.mxu0 0
        %857 = vmatpush1.bf16.msra.mxu0 0
        %858 = vmatprep.subr.bf16.mxu0 0
        %859 = vmatpush1.bf16.msra.mxu0 0
        %860 = vmatprep.subr.bf16.mxu0 0
        %861 = vmatpush1.bf16.msra.mxu0 0
        %862 = vmatprep.subr.bf16.mxu0 0
        %863 = vmatpush1.bf16.msra.mxu0 0
        %864 = vmatprep.subr.bf16.mxu0 0
        %865 = vmatpush1.bf16.msra.mxu0 0
        %866 = vmatprep.subr.bf16.mxu0 0
        %867 = vmatpush1.bf16.msra.mxu0 0
        %868 = vmatprep.subr.bf16.mxu0 0
        %869 = vmatpush1.bf16.msra.mxu0 0
        %870 = vmatprep.subr.bf16.mxu0 %v854
        %871 = vmatpush1.bf16.msra.mxu0 %v851
        %872 = vmatprep.subr.bf16.mxu0 0
        %873 = vmatpush2.bf16.msra.mxu0 0
        %874 = vmatprep.subr.bf16.mxu0 0
        %875 = vmatpush2.bf16.msra.mxu0 0
        %876 = vmatprep.subr.bf16.mxu0 0
        %877 = vmatpush2.bf16.msra.mxu0 0
        %878 = vmatprep.subr.bf16.mxu0 0
        %879 = vmatpush2.bf16.msra.mxu0 0
        %880 = vmatprep.subr.bf16.mxu0 0
        %881 = vmatpush2.bf16.msra.mxu0 0
        %882 = vmatprep.subr.bf16.mxu0 0
        %883 = vmatpush2.bf16.msra.mxu0 0
        %884 = vmatprep.subr.bf16.mxu0 0
        %885 = vmatpush2.bf16.msra.mxu0 0
        %886 = vmatprep.subr.bf16.mxu0 0
        %887 = vmatpush2.bf16.msra.mxu0 0
        %888 = vmatprep.mubr.bf16.mxu0 0
        %889 = vmatmul.mubr.bf16.gmra.mxu0 %v848
        %v890 = vpop.f32.mrf.mxu0
        %v891 = vadd.f32 0.0, %v890
        %v892 = vpop.f32.mrf.mxu0
        %v893 = vadd.f32 0.0, %v892
        %v894 = vpop.f32.mrf.mxu0
        %v895 = vpop.f32.mrf.mxu0
        %896 = vdwg.mxu0
        %v897 = vadd.f32 %v813, %v891
        %v898 = vadd.f32 %v814, %v893
        %v899 = vld [vmem:[#allocation2 + $0x2] sm:$0x3f]
        %v901 = vcombine.high %v899, %v899
        %v903 = vunpack.c.l.s4 1983009808
        %v904 = vunpack.c.0.s8 %v903
        %v905 = vlaneseq
        %v906 = vshrl.u32 %v905, 7
        %v907 = vsub.s32 %v904, %v906
        %v908 = vrot.slane %v899, %v907
        %v910 = vunpack.c.l.s4 1983009808
        %v911 = vunpack.c.0.s8 %v910
        %v912 = vlaneseq
        %v913 = vshrl.u32 %v912, 7
        %v914 = vsub.s32 %v911, %v913
        %v915 = vrot.slane %v901, %v914
        %v916 = vcombine.high %v908, %v908
        %917 = vrot.lane.b32.xlu0 %v908, 112
        %v918 = vpop.permute.xlu0 %917
        %919 = vrot.lane.b32.xlu0 %v916, 112
        %v920 = vpop.permute.xlu0 %919
        %921 = vrot.lane.b32.xlu0 %v915, 112
        %v922 = vpop.permute.xlu0 %921
        %vm923 = vcmask 916480
        %v924 = vsel %vm923, %v918, %v920
        %v925 = vsel %vm923, %v920, %v922
        %v927 = vsel %vm345, %v261, 0
        %v930 = vsel %vm349, %v924, 0
        %v933 = vsel %vm349, %v925, 0
        %935 = vmatprep.subr.bf16.mxu0 0
        %936 = vmatpush1.bf16.msra.mxu0 0
        %937 = vmatprep.subr.bf16.mxu0 0
        %938 = vmatpush1.bf16.msra.mxu0 0
        %939 = vmatprep.subr.bf16.mxu0 0
        %940 = vmatpush1.bf16.msra.mxu0 0
        %941 = vmatprep.subr.bf16.mxu0 0
        %942 = vmatpush1.bf16.msra.mxu0 0
        %943 = vmatprep.subr.bf16.mxu0 0
        %944 = vmatpush1.bf16.msra.mxu0 0
        %945 = vmatprep.subr.bf16.mxu0 0
        %946 = vmatpush1.bf16.msra.mxu0 0
        %947 = vmatprep.subr.bf16.mxu0 0
        %948 = vmatpush1.bf16.msra.mxu0 0
        %949 = vmatprep.subr.bf16.mxu0 %v933
        %950 = vmatpush1.bf16.msra.mxu0 %v930
        %951 = vmatprep.subr.bf16.mxu0 0
        %952 = vmatpush2.bf16.msra.mxu0 0
        %953 = vmatprep.subr.bf16.mxu0 0
        %954 = vmatpush2.bf16.msra.mxu0 0
        %955 = vmatprep.subr.bf16.mxu0 0
        %956 = vmatpush2.bf16.msra.mxu0 0
        %957 = vmatprep.subr.bf16.mxu0 0
        %958 = vmatpush2.bf16.msra.mxu0 0
        %959 = vmatprep.subr.bf16.mxu0 0
        %960 = vmatpush2.bf16.msra.mxu0 0
        %961 = vmatprep.subr.bf16.mxu0 0
        %962 = vmatpush2.bf16.msra.mxu0 0
        %963 = vmatprep.subr.bf16.mxu0 0
        %964 = vmatpush2.bf16.msra.mxu0 0
        %965 = vmatprep.subr.bf16.mxu0 0
        %966 = vmatpush2.bf16.msra.mxu0 0
        %967 = vmatprep.mubr.bf16.mxu0 0
        %968 = vmatmul.mubr.bf16.gmra.mxu0 %v927
        %v969 = vpop.f32.mrf.mxu0
        %v970 = vadd.f32 0.0, %v969
        %v971 = vpop.f32.mrf.mxu0
        %v972 = vadd.f32 0.0, %v971
        %v973 = vpop.f32.mrf.mxu0
        %v974 = vpop.f32.mrf.mxu0
        %975 = vdwg.mxu0
        %v976 = vadd.f32 %v897, %v970
        %v977 = vadd.f32 %v898, %v972
        %v978 = vld [vmem:[#allocation2 + $0x2] sm:$0x3f]
        %979 = vrot.lane.b32.xlu0 %v497, 17
        %v980 = vpop.permute.xlu0 %979
        %v981 = vrot.slane %v980, 6
        %v982 = vsel %vm420, %v981, %v980
        %v984 = vmul.bf16 %v978, %v982
        %v986 = vcombine.high %v984, %v984
        %v988 = vunpack.c.l.s4 1983009808
        %v989 = vunpack.c.0.s8 %v988
        %v990 = vlaneseq
        %v991 = vshrl.u32 %v990, 7
        %v992 = vsub.s32 %v989, %v991
        %v993 = vrot.slane %v984, %v992
        %v995 = vunpack.c.l.s4 1983009808
        %v996 = vunpack.c.0.s8 %v995
        %v997 = vlaneseq
        %v998 = vshrl.u32 %v997, 7
        %v999 = vsub.s32 %v996, %v998
        %v1000 = vrot.slane %v986, %v999
        %v1001 = vcombine.high %v993, %v993
        %1002 = vrot.lane.b32.xlu0 %v993, 111
        %v1003 = vpop.permute.xlu0 %1002
        %1004 = vrot.lane.b32.xlu0 %v1001, 111
        %v1005 = vpop.permute.xlu0 %1004
        %1006 = vrot.lane.b32.xlu0 %v1000, 111
        %v1007 = vpop.permute.xlu0 %1006
        %v1008 = vsel %vm315, %v1003, %v1005
        %v1009 = vsel %vm315, %v1005, %v1007
        %v1011 = vsel %vm345, %v262, 0
        %v1014 = vsel %vm349, %v1008, 0
        %v1017 = vsel %vm349, %v1009, 0
        %1019 = vmatprep.subr.bf16.mxu0 0
        %1020 = vmatpush1.bf16.msra.mxu0 0
        %1021 = vmatprep.subr.bf16.mxu0 0
        %1022 = vmatpush1.bf16.msra.mxu0 0
        %1023 = vmatprep.subr.bf16.mxu0 0
        %1024 = vmatpush1.bf16.msra.mxu0 0
        %1025 = vmatprep.subr.bf16.mxu0 0
        %1026 = vmatpush1.bf16.msra.mxu0 0
        %1027 = vmatprep.subr.bf16.mxu0 0
        %1028 = vmatpush1.bf16.msra.mxu0 0
        %1029 = vmatprep.subr.bf16.mxu0 0
        %1030 = vmatpush1.bf16.msra.mxu0 0
        %1031 = vmatprep.subr.bf16.mxu0 0
        %1032 = vmatpush1.bf16.msra.mxu0 0
        %1033 = vmatprep.subr.bf16.mxu0 %v1017
        %1034 = vmatpush1.bf16.msra.mxu0 %v1014
        %1035 = vmatprep.subr.bf16.mxu0 0
        %1036 = vmatpush2.bf16.msra.mxu0 0
        %1037 = vmatprep.subr.bf16.mxu0 0
        %1038 = vmatpush2.bf16.msra.mxu0 0
        %1039 = vmatprep.subr.bf16.mxu0 0
        %1040 = vmatpush2.bf16.msra.mxu0 0
        %1041 = vmatprep.subr.bf16.mxu0 0
        %1042 = vmatpush2.bf16.msra.mxu0 0
        %1043 = vmatprep.subr.bf16.mxu0 0
        %1044 = vmatpush2.bf16.msra.mxu0 0
        %1045 = vmatprep.subr.bf16.mxu0 0
        %1046 = vmatpush2.bf16.msra.mxu0 0
        %1047 = vmatprep.subr.bf16.mxu0 0
        %1048 = vmatpush2.bf16.msra.mxu0 0
        %1049 = vmatprep.subr.bf16.mxu0 0
        %1050 = vmatpush2.bf16.msra.mxu0 0
        %1051 = vmatprep.mubr.bf16.mxu0 0
        %1052 = vmatmul.mubr.bf16.gmra.mxu0 %v1011
        %v1053 = vpop.f32.mrf.mxu0
        %v1054 = vadd.f32 0.0, %v1053
        %v1055 = vpop.f32.mrf.mxu0
        %v1056 = vadd.f32 0.0, %v1055
        %v1057 = vpop.f32.mrf.mxu0
        %v1058 = vpop.f32.mrf.mxu0
        %1059 = vdwg.mxu0
        %v1060 = vadd.f32 %v976, %v1054
        %v1061 = vadd.f32 %v977, %v1056
        %v1062 = vld [vmem:[%s2] sm:$0xff]
        %1064 = vset.pattern.permute.xlu0 0
        %1065 = vperm.xlu0 %1064, %v1062
        %v1066 = vpop.permute.xlu0 %1065
        %v1068 = vadd.f32 %v1060, %v1066
        %v1069 = vadd.f32 %v1061, %v1066
        %v1072 = vcombine.low %v1068, %v1069
        %1074 = vst [vmem:[%s221] sm:$0xff] %v1072
        %v1075 = vcombine.high %v1068, %v1069
        %1077 = vst [vmem:[%s228] sm:$0xff] %v1075
        %s1078 = sand.u32 %s120, 1
        %s1079 = scalar_lea.sflag [#allocation4], %s1078
        %s1080 = sand.u32 %s120, 1
        %s1081 = smul.addr %s1080, 8
        %s1082 = scalar_lea.vmem [#allocation3], %s1081
        %s1083 = sand.u32 %s146, 1
        %s1084 = scalar_lea.sflag [#allocation6], %s1083
        %s1085 = sand.u32 %s146, 1
        %s1086 = smul.addr %s1085, 8
        %s1087 = scalar_lea.vmem [#allocation5], %s1086
        // Predicated region
        $region37: #{tpu_custom_call.1} parent=35 // pred_check
          %p1088 = pneg %p130
        $region38: #{tpu_custom_call.1} parent=35 // pred_check_branch
          %1090 = sbr.rel (%p1088) target = $region40
        $region39: #{tpu_custom_call.1} parent=35 // pred_region
          %s1092 = ssub.s32 128, 128
          %1093 = vsyncadd %s1079, %s1092
          %s1094 = smul.addr %s23, 2
          %s1095 = smul.addr %s1094, 64
          %s1096 = scalar_lea.hbm %s4, %s1095
          %s1098 = sshll.u32 %s1082, 4
          %s1099 = int_to_ptr.vmem [resolvable:$true] %s1098
          %1101 = dma.vmem_to_hbm [thread:$0]  %s1099, 128, %s1096, %s1079
        $region40: #{tpu_custom_call.1} parent=35 // pred_fallthru
          _
        // Predicated region
        $region41: #{tpu_custom_call.1} parent=35 // pred_check
          %p1102 = pneg %p156
        $region42: #{tpu_custom_call.1} parent=35 // pred_check_branch
          %1104 = sbr.rel (%p1102) target = $region44
        $region43: #{tpu_custom_call.1} parent=35 // pred_region
          %s1106 = ssub.s32 128, 128
          %1107 = vsyncadd %s1084, %s1106
          %s1108 = smul.addr %s23, 2
          %s1109 = smul.addr %s1108, 64
          %s1110 = scalar_lea.hbm %s5, %s1109
          %s1112 = sshll.u32 %s1087, 4
          %s1113 = int_to_ptr.vmem [resolvable:$true] %s1112
          %1115 = dma.vmem_to_hbm [thread:$0]  %s1113, 128, %s1110, %s1084
        $region44: #{tpu_custom_call.1} parent=35 // pred_fallthru
          _
      $region36: #{tpu_custom_call.1} parent=5 // pred_fallthru
        _
      %p1116 = scmp.le.s32.totalorder 2, %s18
      // Predicated region
      $region45: #{tpu_custom_call.1} parent=5 // pred_check
        %p1117 = pneg %p1116
      $region46: #{tpu_custom_call.1} parent=5 // pred_check_branch
        %1119 = sbr.rel (%p1117) target = $region48
      $region47: #{tpu_custom_call.1} parent=5 // pred_region
        %s1120 = ssub.s32 %s18, 2
        // Predicated region
        $region49: #{tpu_custom_call.1} parent=47 // pred_check
          %p1121 = pneg %p136
        $region50: #{tpu_custom_call.1} parent=47 // pred_check_branch
          %1123 = sbr.rel (%p1121) target = $region52
        $region51: #{tpu_custom_call.1} parent=47 // pred_region
          %s1124 = sand.u32 %s121, 1
          %s1125 = scalar_lea.sflag [#allocation4], %s1124
          %s1126 = sand.u32 %s121, 1
          %s1127 = smul.addr %s1126, 8
          %s1128 = scalar_lea.vmem [#allocation3], %s1127
          %1129 = dma.done %s1125, 128
        $region52: #{tpu_custom_call.1} parent=47 // pred_fallthru
          _
        // Predicated region
        $region53: #{tpu_custom_call.1} parent=47 // pred_check
          %p1130 = pneg %p162
        $region54: #{tpu_custom_call.1} parent=47 // pred_check_branch
          %1132 = sbr.rel (%p1130) target = $region56
        $region55: #{tpu_custom_call.1} parent=47 // pred_region
          %s1133 = sand.u32 %s147, 1
          %s1134 = scalar_lea.sflag [#allocation6], %s1133
          %s1135 = sand.u32 %s147, 1
          %s1136 = smul.addr %s1135, 8
          %s1137 = scalar_lea.vmem [#allocation5], %s1136
          %1138 = dma.done %s1134, 128
        $region56: #{tpu_custom_call.1} parent=47 // pred_fallthru
          _
      $region48: #{tpu_custom_call.1} parent=5 // pred_fallthru
        _
    $region6: #{tpu_custom_call.1} parent=1 // loop_footer
      %s22 = sadd.s32 1, %s18
    $region7: #{tpu_custom_call.1} parent=1 // loop_footer_branch
      %17 = sbr.rel target = $region3
    $region8: #{tpu_custom_call.1} parent=1 // loop_exit
      _
    %1139 = vsyncpa [#allocation4], 1
    %s1140 = scalar_lea.sflag [#allocation4], 1
    %1141 = vsyncpa %s1140, 1
    %1142 = vsyncpa [#allocation6], 1
    %s1143 = scalar_lea.sflag [#allocation6], 1
    %1144 = vsyncpa %s1143, 1

</llo_original>
